<compile_context>
chip_gen: v5e
topology: v5e:2x2
jax: 0.10.0
libtpu: 0.0.40
codegen_flags: <defaults>
</compile_context>

<pallas_src>
import functools

import jax
import jax.numpy as jnp
from jax.experimental import pallas as pl
from jax.experimental.pallas import tpu as pltpu


# ----------------------------- configuration --------------------------------
IN_FEATURES = 16
OUT_FEATURES = 32
GRID_SIZE = 3
SPLINE_ORDER = 3
SCALE_BASE = 1.0
SCALE_SPLINE = 1.0
GRID_RANGE = (-1.0, 1.0)

C = GRID_SIZE + SPLINE_ORDER                 # B-spline basis functions per input
N_KNOTS = GRID_SIZE + 2 * SPLINE_ORDER + 1   # knots per input feature

BATCH = 16                                   # demo batch
MAX_ROW_TILE = 128                           # row tile when batch is large


# ------------------------------- Pallas kernel ------------------------------
def kan_linear_kernel(xt_ref, g_ref, inv_l_ref, ninv_r_ref, wsp_ref, wb_ref,
                      o_ref, *, spline_order, in_features, n_knots):
    """One row-tile of the KANLinear forward, interval-in-lane layout.

    xt_ref    : (tm, NK*IN)   x tiled across knots: lane t*IN+i = x[:, i]
    g_ref     : (tm, NK*IN)   knot slab:            lane t*IN+i = grid[i, t]
    inv_l_ref : (SO, tm, (NK-2)*IN)  1/(g[j+k]-g[j])     per level (lane-padded)
    ninv_r_ref: (SO, tm, (NK-2)*IN) -1/(g[j+k+1]-g[j+1]) per level (lane-padded)
    wsp_ref   : (C*IN, OUT)   spline weight, row c*IN+i = scaled_sw[o, i, c]
    wb_ref    : (IN, OUT)     base_weight.T
    o_ref     : (tm, OUT)
    """
    fin = in_features
    xt = xt_ref[...]                                  # (tm, NK*IN) f32
    diff = xt - g_ref[...]                            # diff[:, t*IN+i] = x_i - g[t,i]

    # order-0 bases from one comparison plane: for a monotone knot grid,
    # 1[g_j <= x < g_{j+1}] == (x >= g_j) - (x >= g_{j+1}).
    ge = (diff >= 0.0).astype(diff.dtype)             # (tm, NK*IN)
    w0 = (n_knots - 1) * fin
    bases = ge[:, :w0] - ge[:, fin:fin + w0]          # (tm, (NK-1)*IN)

    # Cox-de-Boor recursion; widths shrink by IN per level so every lane is a
    # valid interval (no masking / wrap-around needed). Shifts are static lane
    # slices; coefficients are precomputed reciprocals (mul-only inner body).
    for k in range(1, spline_order + 1):
        ow = (n_knots - 1 - k) * fin                  # valid lanes this level
        left = diff[:, :ow] * inv_l_ref[k - 1, :, :ow]
        right = (diff[:, (k + 1) * fin:(k + 1) * fin + ow]
                 * ninv_r_ref[k - 1, :, :ow])
        bases = left * bases[:, :ow] + right * bases[:, fin:fin + ow]
    # bases: (tm, C*IN), lane c*IN+i = B_c(x_i)  -> already the contraction layout

    # base branch: lanes [0, IN) of xt are x itself
    x = xt[:, :fin]
    x_act = x * jax.nn.sigmoid(x)                     # SiLU (EUP + VPU)

    # two small MXU dots (no lane concatenate / shuffle needed)
    out = jnp.dot(bases, wsp_ref[...], preferred_element_type=jnp.float32)
    out = out + jnp.dot(x_act, wb_ref[...], preferred_element_type=jnp.float32)
    o_ref[...] = out.astype(o_ref.dtype)


# --------------------------------- wrapper ----------------------------------
def _kan_linear_forward(x, grid, base_weight, spline_weight, spline_scaler):
    """x: (B, IN) -> (B, OUT). Parameter shapes match the PyTorch module."""
    B, IN = x.shape
    OUT = base_weight.shape[0]
    n_c = spline_weight.shape[2]
    nk = grid.shape[1]
    so = nk - n_c - 1                                 # spline order from shapes

    # row tiling: whole batch in one step when small, 128-row tiles otherwise
    tm = B if B <= MAX_ROW_TILE else MAX_ROW_TILE
    b_pad = ((B + tm - 1) // tm) * tm

    x32 = x.astype(jnp.float32)
    if b_pad != B:
        x32 = jnp.pad(x32, ((0, b_pad - B), (0, 0)))

    # ---- interval-in-lane dense layouts (lane = knot/interval * IN + feature) ----
    grid_t = grid.T.astype(jnp.float32)               # (NK, IN)
    w_d = nk * IN                                      # knot/diff slab width
    x_tiled = jnp.tile(x32, (1, nk))                   # (B_pad, NK*IN)
    g_dense = jnp.broadcast_to(grid_t.reshape(1, w_d), (tm, w_d))

    # per-level reciprocal coefficient slabs; zero-padded to a common lane width
    # (the padding is sliced off inside the kernel before any multiply).
    w_inv = (nk - 2) * IN
    il_rows, nir_rows = [], []
    for k in range(1, so + 1):
        nj = nk - 1 - k                                # valid output intervals
        il = 1.0 / (grid_t[k:k + nj] - grid_t[0:nj])                   # (nj, IN)
        nir = -1.0 / (grid_t[k + 1:k + 1 + nj] - grid_t[1:1 + nj])     # (nj, IN)
        il_rows.append(jnp.pad(il.reshape(1, nj * IN),
                               ((0, 0), (0, w_inv - nj * IN))))
        nir_rows.append(jnp.pad(nir.reshape(1, nj * IN),
                                ((0, 0), (0, w_inv - nj * IN))))
    inv_l = jnp.broadcast_to(
        jnp.concatenate(il_rows, axis=0)[:, None, :], (so, tm, w_inv))
    ninv_r = jnp.broadcast_to(
        jnp.concatenate(nir_rows, axis=0)[:, None, :], (so, tm, w_inv))

    # ---- weights in the kernel's contraction layouts ----
    w_base = base_weight.T.astype(jnp.float32)                          # (IN, OUT)
    scaled_sw = (spline_weight * spline_scaler[:, :, None]).astype(jnp.float32)
    w_spline = jnp.transpose(scaled_sw, (2, 1, 0)).reshape(n_c * IN, OUT)

    kernel = functools.partial(kan_linear_kernel, spline_order=so,
                               in_features=IN, n_knots=nk)

    out = pl.pallas_call(
        kernel,
        out_shape=jax.ShapeDtypeStruct((b_pad, OUT), jnp.float32),
        grid_spec=pltpu.PrefetchScalarGridSpec(
            num_scalar_prefetch=0,
            grid=(b_pad // tm,),
            in_specs=[
                pl.BlockSpec((tm, w_d), lambda r: (r, 0)),
                pl.BlockSpec((tm, w_d), lambda r: (0, 0)),
                pl.BlockSpec((so, tm, w_inv), lambda r: (0, 0, 0)),
                pl.BlockSpec((so, tm, w_inv), lambda r: (0, 0, 0)),
                pl.BlockSpec((n_c * IN, OUT), lambda r: (0, 0)),
                pl.BlockSpec((IN, OUT), lambda r: (0, 0)),
            ],
            out_specs=pl.BlockSpec((tm, OUT), lambda r: (r, 0)),
        ),
        compiler_params=pltpu.CompilerParams(
            dimension_semantics=("parallel",),        # row tiles are independent
        ),
    )(x_tiled, g_dense, inv_l, ninv_r, w_spline, w_base)
    return out[:B]


kan_linear_forward = jax.jit(_kan_linear_forward)


# --------------------------- reference (plain JAX) ---------------------------
def kan_linear_reference(x, grid, base_weight, spline_weight, spline_scaler):
    base = jax.nn.silu(x) @ base_weight.T
    g = grid                                            # (IN, N_KNOTS)
    xe = x[:, :, None]
    bases = jnp.logical_and(xe >= g[None, :, :-1], xe < g[None, :, 1:]).astype(x.dtype)
    for k in range(1, SPLINE_ORDER + 1):
        bases = (
            (xe - g[None, :, :-(k + 1)])
            / (g[None, :, k:-1] - g[None, :, :-(k + 1)])
            * bases[:, :, :-1]
            + (g[None, :, k + 1:] - xe)
            / (g[None, :, k + 1:] - g[None, :, 1:-k])
            * bases[:, :, 1:]
        )
    ssw = spline_weight * spline_scaler[:, :, None]     # (OUT, IN, C)
    spline_out = bases.reshape(x.shape[0], -1) @ ssw.reshape(OUT_FEATURES, -1).T
    return base + spline_out


# ----------------------------------- main ------------------------------------
if __name__ == "__main__":
    key = jax.random.PRNGKey(0)
    k_x, k_x2, k_bw, k_sw = jax.random.split(key, 4)

    # B-spline knot grid buffer, same construction as the PyTorch module.
    h = (GRID_RANGE[1] - GRID_RANGE[0]) / GRID_SIZE
    knots = (
        jnp.arange(-SPLINE_ORDER, GRID_SIZE + SPLINE_ORDER + 1, dtype=jnp.float32) * h
        + GRID_RANGE[0]
    )                                                   # (N_KNOTS,)
    grid = jnp.broadcast_to(knots, (IN_FEATURES, N_KNOTS))

    # Deterministic parameter init (shapes match the module).
    bound = SCALE_BASE * jnp.sqrt(6.0 / (IN_FEATURES + OUT_FEATURES))
    base_weight = jax.random.uniform(
        k_bw, (OUT_FEATURES, IN_FEATURES), jnp.float32, minval=-bound, maxval=bound
    )
    # TODO(synk): original init uses an lstsq-based curve2coeff fit of noise;
    # that only affects initial parameter values, not forward semantics.
    spline_weight = 0.1 * jax.random.normal(
        k_sw, (OUT_FEATURES, IN_FEATURES, C), jnp.float32
    )
    spline_scaler = jnp.full((OUT_FEATURES, IN_FEATURES), SCALE_SPLINE, jnp.float32)

    # ---- small batch: single grid step ----
    x = jax.random.normal(k_x, (BATCH, IN_FEATURES), jnp.float32) * 0.8
    out = jax.block_until_ready(
        kan_linear_forward(x, grid, base_weight, spline_weight, spline_scaler))
    ref = kan_linear_reference(x, grid, base_weight, spline_weight, spline_scaler)
    assert out.shape == (BATCH, IN_FEATURES * 0 + OUT_FEATURES)
    assert jnp.allclose(out, ref, rtol=1e-4, atol=1e-4), "mismatch vs reference (B=16)"

    # ---- larger batch: multi-step "parallel" row grid with padding ----
    B2 = 200
    x2 = jax.random.normal(k_x2, (B2, IN_FEATURES), jnp.float32) * 0.8
    out2 = jax.block_until_ready(
        kan_linear_forward(x2, grid, base_weight, spline_weight, spline_scaler))
    ref2 = kan_linear_reference(x2, grid, base_weight, spline_weight, spline_scaler)
    assert out2.shape == (B2, OUT_FEATURES)
    assert jnp.allclose(out2, ref2, rtol=1e-4, atol=1e-4), "mismatch vs reference (B=200)"

    print("KERNEL_OK")
</pallas_src>

<mosaic_0001>
module attributes {stable_mosaic.version = 11 : i64} {
  func.func @kan_linear_kernel(%arg0: i32, %arg1: memref<16x160xf32, #tpu.memory_space<vmem>>, %arg2: memref<16x160xf32, #tpu.memory_space<vmem>>, %arg3: memref<3x16x128xf32, #tpu.memory_space<vmem>>, %arg4: memref<3x16x128xf32, #tpu.memory_space<vmem>>, %arg5: memref<96x32xf32, #tpu.memory_space<vmem>>, %arg6: memref<16x32xf32, #tpu.memory_space<vmem>>, %arg7: memref<16x32xf32, #tpu.memory_space<vmem>>) attributes {dimension_semantics = [#tpu.dimension_semantics<parallel>], iteration_bounds = array<i64: 1>, scalar_prefetch = 0 : i64, scratch_operands = 0 : i64, tpu.core_type = #tpu.core_type<tc>, window_params = [{transform_indices = @transform_0, window_bounds = array<i64: 16, 160>}, {pipeline_mode = #tpu.pipeline_mode<synchronous>, transform_indices = @transform_1, window_bounds = array<i64: 16, 160>}, {pipeline_mode = #tpu.pipeline_mode<synchronous>, transform_indices = @transform_2, window_bounds = array<i64: 3, 16, 128>}, {pipeline_mode = #tpu.pipeline_mode<synchronous>, transform_indices = @transform_3, window_bounds = array<i64: 3, 16, 128>}, {pipeline_mode = #tpu.pipeline_mode<synchronous>, transform_indices = @transform_4, window_bounds = array<i64: 96, 32>}, {pipeline_mode = #tpu.pipeline_mode<synchronous>, transform_indices = @transform_5, window_bounds = array<i64: 16, 32>}, {transform_indices = @transform_6, window_bounds = array<i64: 16, 32>}]} {
    %c0 = arith.constant 0 : index
    %c0_0 = arith.constant 0 : index
    %0 = vector.load %arg1[%c0, %c0_0] : memref<16x160xf32, #tpu.memory_space<vmem>>, vector<16x160xf32>
    %c0_1 = arith.constant 0 : index
    %c0_2 = arith.constant 0 : index
    %1 = vector.load %arg2[%c0_1, %c0_2] : memref<16x160xf32, #tpu.memory_space<vmem>>, vector<16x160xf32>
    %2 = arith.subf %0, %1 : vector<16x160xf32>
    %cst = arith.constant 0.000000e+00 : f32
    %3 = vector.broadcast %cst : f32 to vector<16x160xf32>
    %4 = arith.cmpf oge, %2, %3 : vector<16x160xf32>
    %5 = arith.extui %4 : vector<16x160xi1> to vector<16x160xi32>
    %6 = arith.sitofp %5 : vector<16x160xi32> to vector<16x160xf32>
    %7 = vector.extract_strided_slice %6 {offsets = [0, 0], sizes = [16, 144], strides = [1, 1]} : vector<16x160xf32> to vector<16x144xf32>
    %8 = vector.extract_strided_slice %6 {offsets = [0, 16], sizes = [16, 144], strides = [1, 1]} : vector<16x160xf32> to vector<16x144xf32>
    %9 = arith.subf %7, %8 : vector<16x144xf32>
    %10 = vector.extract_strided_slice %2 {offsets = [0, 0], sizes = [16, 128], strides = [1, 1]} : vector<16x160xf32> to vector<16x128xf32>
    %c0_3 = arith.constant 0 : index
    %c0_4 = arith.constant 0 : index
    %c0_5 = arith.constant 0 : index
    %11 = vector.load %arg3[%c0_3, %c0_4, %c0_5] : memref<3x16x128xf32, #tpu.memory_space<vmem>>, vector<1x16x128xf32>
    %12 = vector.shape_cast %11 : vector<1x16x128xf32> to vector<16x128xf32>
    %13 = arith.mulf %10, %12 : vector<16x128xf32>
    %14 = vector.extract_strided_slice %2 {offsets = [0, 32], sizes = [16, 128], strides = [1, 1]} : vector<16x160xf32> to vector<16x128xf32>
    %c0_6 = arith.constant 0 : index
    %c0_7 = arith.constant 0 : index
    %c0_8 = arith.constant 0 : index
    %15 = vector.load %arg4[%c0_6, %c0_7, %c0_8] : memref<3x16x128xf32, #tpu.memory_space<vmem>>, vector<1x16x128xf32>
    %16 = vector.shape_cast %15 : vector<1x16x128xf32> to vector<16x128xf32>
    %17 = arith.mulf %14, %16 : vector<16x128xf32>
    %18 = vector.extract_strided_slice %9 {offsets = [0, 0], sizes = [16, 128], strides = [1, 1]} : vector<16x144xf32> to vector<16x128xf32>
    %19 = arith.mulf %13, %18 : vector<16x128xf32>
    %20 = vector.extract_strided_slice %9 {offsets = [0, 16], sizes = [16, 128], strides = [1, 1]} : vector<16x144xf32> to vector<16x128xf32>
    %21 = arith.mulf %17, %20 : vector<16x128xf32>
    %22 = arith.addf %19, %21 : vector<16x128xf32>
    %23 = vector.extract_strided_slice %2 {offsets = [0, 0], sizes = [16, 112], strides = [1, 1]} : vector<16x160xf32> to vector<16x112xf32>
    %c1 = arith.constant 1 : index
    %c0_9 = arith.constant 0 : index
    %c0_10 = arith.constant 0 : index
    %24 = vector.load %arg3[%c1, %c0_9, %c0_10] : memref<3x16x128xf32, #tpu.memory_space<vmem>>, vector<1x16x112xf32>
    %25 = vector.shape_cast %24 : vector<1x16x112xf32> to vector<16x112xf32>
    %26 = arith.mulf %23, %25 : vector<16x112xf32>
    %27 = vector.extract_strided_slice %2 {offsets = [0, 48], sizes = [16, 112], strides = [1, 1]} : vector<16x160xf32> to vector<16x112xf32>
    %c1_11 = arith.constant 1 : index
    %c0_12 = arith.constant 0 : index
    %c0_13 = arith.constant 0 : index
    %28 = vector.load %arg4[%c1_11, %c0_12, %c0_13] : memref<3x16x128xf32, #tpu.memory_space<vmem>>, vector<1x16x112xf32>
    %29 = vector.shape_cast %28 : vector<1x16x112xf32> to vector<16x112xf32>
    %30 = arith.mulf %27, %29 : vector<16x112xf32>
    %31 = vector.extract_strided_slice %22 {offsets = [0, 0], sizes = [16, 112], strides = [1, 1]} : vector<16x128xf32> to vector<16x112xf32>
    %32 = arith.mulf %26, %31 : vector<16x112xf32>
    %33 = vector.extract_strided_slice %22 {offsets = [0, 16], sizes = [16, 112], strides = [1, 1]} : vector<16x128xf32> to vector<16x112xf32>
    %34 = arith.mulf %30, %33 : vector<16x112xf32>
    %35 = arith.addf %32, %34 : vector<16x112xf32>
    %36 = vector.extract_strided_slice %2 {offsets = [0, 0], sizes = [16, 96], strides = [1, 1]} : vector<16x160xf32> to vector<16x96xf32>
    %c2 = arith.constant 2 : index
    %c0_14 = arith.constant 0 : index
    %c0_15 = arith.constant 0 : index
    %37 = vector.load %arg3[%c2, %c0_14, %c0_15] : memref<3x16x128xf32, #tpu.memory_space<vmem>>, vector<1x16x96xf32>
    %38 = vector.shape_cast %37 : vector<1x16x96xf32> to vector<16x96xf32>
    %39 = arith.mulf %36, %38 : vector<16x96xf32>
    %40 = vector.extract_strided_slice %2 {offsets = [0, 64], sizes = [16, 96], strides = [1, 1]} : vector<16x160xf32> to vector<16x96xf32>
    %c2_16 = arith.constant 2 : index
    %c0_17 = arith.constant 0 : index
    %c0_18 = arith.constant 0 : index
    %41 = vector.load %arg4[%c2_16, %c0_17, %c0_18] : memref<3x16x128xf32, #tpu.memory_space<vmem>>, vector<1x16x96xf32>
    %42 = vector.shape_cast %41 : vector<1x16x96xf32> to vector<16x96xf32>
    %43 = arith.mulf %40, %42 : vector<16x96xf32>
    %44 = vector.extract_strided_slice %35 {offsets = [0, 0], sizes = [16, 96], strides = [1, 1]} : vector<16x112xf32> to vector<16x96xf32>
    %45 = arith.mulf %39, %44 : vector<16x96xf32>
    %46 = vector.extract_strided_slice %35 {offsets = [0, 16], sizes = [16, 96], strides = [1, 1]} : vector<16x112xf32> to vector<16x96xf32>
    %47 = arith.mulf %43, %46 : vector<16x96xf32>
    %48 = arith.addf %45, %47 : vector<16x96xf32>
    %49 = vector.extract_strided_slice %0 {offsets = [0, 0], sizes = [16, 16], strides = [1, 1]} : vector<16x160xf32> to vector<16x16xf32>
    %50 = arith.negf %49 : vector<16x16xf32>
    %51 = math.exp %50 : vector<16x16xf32>
    %cst_19 = arith.constant 1.000000e+00 : f32
    %52 = vector.broadcast %cst_19 : f32 to vector<16x16xf32>
    %53 = arith.addf %52, %51 : vector<16x16xf32>
    %54 = arith.divf %52, %53 : vector<16x16xf32>
    %55 = arith.mulf %49, %54 : vector<16x16xf32>
    %c0_20 = arith.constant 0 : index
    %c0_21 = arith.constant 0 : index
    %56 = vector.load %arg5[%c0_20, %c0_21] : memref<96x32xf32, #tpu.memory_space<vmem>>, vector<96x32xf32>
    %cst_22 = arith.constant dense<0.000000e+00> : vector<16x32xf32>
    %57 = tpu.matmul %48, %56, %cst_22 {dimension_numbers = #tpu.dot_dimension_numbers<[1], [0], [0], [1], [0, 0, 1, 1], [], []>} : vector<16x96xf32>, vector<96x32xf32>, vector<16x32xf32> -> vector<16x32xf32>
    %c0_23 = arith.constant 0 : index
    %c0_24 = arith.constant 0 : index
    %58 = vector.load %arg6[%c0_23, %c0_24] : memref<16x32xf32, #tpu.memory_space<vmem>>, vector<16x32xf32>
    %cst_25 = arith.constant dense<0.000000e+00> : vector<16x32xf32>
    %59 = tpu.matmul %55, %58, %cst_25 {dimension_numbers = #tpu.dot_dimension_numbers<[1], [0], [0], [1], [0, 0, 1, 1], [], []>} : vector<16x16xf32>, vector<16x32xf32>, vector<16x32xf32> -> vector<16x32xf32>
    %60 = arith.addf %57, %59 : vector<16x32xf32>
    %c0_26 = arith.constant 0 : index
    %c0_27 = arith.constant 0 : index
    %61 = vector.load %arg7[%c0_26, %c0_27] : memref<16x32xf32, #tpu.memory_space<vmem>>, vector<16x32xf32>
    tpu.vector_store %arg7[%c0_26, %c0_27], %60 {strides = array<i32>} : memref<16x32xf32, #tpu.memory_space<vmem>>, vector<16x32xf32>,
    return
  }
  func.func @transform_0(%arg0: i32) -> (i32, i32) {
    %c0_i32 = arith.constant 0 : i32
    %c0_i32_0 = arith.constant 0 : i32
    return %arg0, %c0_i32 : i32, i32
  }
  func.func @transform_1(%arg0: i32) -> (i32, i32) {
    %c0_i32 = arith.constant 0 : i32
    %c0_i32_0 = arith.constant 0 : i32
    %c0_i32_1 = arith.constant 0 : i32
    return %c0_i32, %c0_i32_0 : i32, i32
  }
  func.func @transform_2(%arg0: i32) -> (i32, i32, i32) {
    %c0_i32 = arith.constant 0 : i32
    %c0_i32_0 = arith.constant 0 : i32
    %c0_i32_1 = arith.constant 0 : i32
    %c0_i32_2 = arith.constant 0 : i32
    return %c0_i32, %c0_i32_0, %c0_i32_1 : i32, i32, i32
  }
  func.func @transform_3(%arg0: i32) -> (i32, i32, i32) {
    %c0_i32 = arith.constant 0 : i32
    %c0_i32_0 = arith.constant 0 : i32
    %c0_i32_1 = arith.constant 0 : i32
    %c0_i32_2 = arith.constant 0 : i32
    return %c0_i32, %c0_i32_0, %c0_i32_1 : i32, i32, i32
  }
  func.func @transform_4(%arg0: i32) -> (i32, i32) {
    %c0_i32 = arith.constant 0 : i32
    %c0_i32_0 = arith.constant 0 : i32
    %c0_i32_1 = arith.constant 0 : i32
    return %c0_i32, %c0_i32_0 : i32, i32
  }
  func.func @transform_5(%arg0: i32) -> (i32, i32) {
    %c0_i32 = arith.constant 0 : i32
    %c0_i32_0 = arith.constant 0 : i32
    %c0_i32_1 = arith.constant 0 : i32
    return %c0_i32, %c0_i32_0 : i32, i32
  }
  func.func @transform_6(%arg0: i32) -> (i32, i32) {
    %c0_i32 = arith.constant 0 : i32
    %c0_i32_0 = arith.constant 0 : i32
    return %arg0, %c0_i32 : i32, i32
  }
}

</mosaic_0001>

<llo_original>
// kernel: tile.9
$region0: #{tile.9}
  %s0 = inlined_call_operand.vmem [shape: f32[16,10,16], index: 0, kind: input, shape index: {}]
  %s1 = inlined_call_operand.vmem [shape: f32[16,160], index: 1, kind: output, shape index: {}]
  %v2 = vld [vmem:[%s0] ss:$8 sm:$0xf]
  %v3 = vld [vmem:[%s0] ss:$8 sm:$0xf0]
  %vm4 = vcmask 1047556
  %v5 = vsel %vm4, %v3, %v2
  %vm6 = vcmask 130048
  %7 = vst.msk [vmem:[%s1] ss:$8 sm:$0x3] %vm6, %v5
  %s8 = scalar_lea.vmem %s1, 4294967281
  %9 = vst.msk [vmem:[%s8] ss:$8 sm:$0xc] %vm6, %v5
  %s10 = scalar_lea.vmem %s1, 4294967266
  %11 = vst.msk [vmem:[%s10] ss:$8 sm:$0x30] %vm6, %v5
  %s12 = scalar_lea.vmem %s1, 4294967251
  %13 = vst.msk [vmem:[%s12] ss:$8 sm:$0xc0] %vm6, %v5
  %s14 = scalar_lea.vmem %s0, 64
  %v15 = vld [vmem:[%s14] ss:$8 sm:$0xf]
  %s16 = scalar_lea.vmem %s0, 64
  %v17 = vld [vmem:[%s16] ss:$8 sm:$0xf0]
  %vm18 = vcmask 1047556
  %v19 = vsel %vm18, %v17, %v15
  %vm20 = vcmask 130048
  %s21 = scalar_lea.vmem %s1, 4
  %22 = vst.msk [vmem:[%s21] ss:$8 sm:$0x3] %vm20, %v19
  %s23 = scalar_lea.vmem %s1, 4294967285
  %24 = vst.msk [vmem:[%s23] ss:$8 sm:$0xc] %vm20, %v19
  %s25 = scalar_lea.vmem %s1, 4294967270
  %26 = vst.msk [vmem:[%s25] ss:$8 sm:$0x30] %vm20, %v19
  %s27 = scalar_lea.vmem %s1, 4294967255
  %28 = vst.msk [vmem:[%s27] ss:$8 sm:$0xc0] %vm20, %v19
  %s29 = scalar_lea.vmem %s0, 128
  %v30 = vld [vmem:[%s29] ss:$8 sm:$0xf]
  %s31 = scalar_lea.vmem %s0, 128
  %v32 = vld [vmem:[%s31] ss:$8 sm:$0xf0]
  %vm33 = vcmask 1047556
  %v34 = vsel %vm33, %v32, %v30
  %vm35 = vcmask 130048
  %s36 = scalar_lea.vmem %s1, 16
  %37 = vst.msk [vmem:[%s36] ss:$8 sm:$0x3] %vm35, %v34
  %s38 = scalar_lea.vmem %s1, 1
  %39 = vst.msk [vmem:[%s38] ss:$8 sm:$0xc] %vm35, %v34
  %s40 = scalar_lea.vmem %s1, 4294967282
  %41 = vst.msk [vmem:[%s40] ss:$8 sm:$0x30] %vm35, %v34
  %s42 = scalar_lea.vmem %s1, 4294967267
  %43 = vst.msk [vmem:[%s42] ss:$8 sm:$0xc0] %vm35, %v34
  %s44 = scalar_lea.vmem %s0, 192
  %v45 = vld [vmem:[%s44] ss:$8 sm:$0xf]
  %s46 = scalar_lea.vmem %s0, 192
  %v47 = vld [vmem:[%s46] ss:$8 sm:$0xf0]
  %vm48 = vcmask 1047556
  %v49 = vsel %vm48, %v47, %v45
  %vm50 = vcmask 130048
  %s51 = scalar_lea.vmem %s1, 20
  %52 = vst.msk [vmem:[%s51] ss:$8 sm:$0x3] %vm50, %v49
  %s53 = scalar_lea.vmem %s1, 5
  %54 = vst.msk [vmem:[%s53] ss:$8 sm:$0xc] %vm50, %v49
  %s55 = scalar_lea.vmem %s1, 4294967286
  %56 = vst.msk [vmem:[%s55] ss:$8 sm:$0x30] %vm50, %v49
  %s57 = scalar_lea.vmem %s1, 4294967271
  %58 = vst.msk [vmem:[%s57] ss:$8 sm:$0xc0] %vm50, %v49
  %s59 = scalar_lea.vmem %s0, 7
  %s60 = smov 3
  %v61 = vld [vmem:[%s59] ss:$16 sm:%s60]
  %s62 = scalar_lea.vmem %s0, 7
  %s63 = smov 12
  %v64 = vld [vmem:[%s62] ss:$16 sm:%s63]
  %vm65 = vcmask 1043458
  %v66 = vsel %vm65, %v64, %v61
  %s67 = scalar_lea.vmem %s0, 7
  %s68 = smov 48
  %v69 = vld [vmem:[%s67] ss:$16 sm:%s68]
  %vm70 = vcmask 1045508
  %v71 = vsel %vm70, %v69, %v66
  %s72 = scalar_lea.vmem %s0, 7
  %s73 = smov 192
  %v74 = vld [vmem:[%s72] ss:$16 sm:%s73]
  %vm75 = vcmask 1047558
  %v76 = vsel %vm75, %v74, %v71
  %77 = vrot.lane.b32.xlu0 %v76, 112
  %v78 = vpop.permute.xlu0 %77
  %vm79 = vcmask 1048448
  %80 = vst.msk [vmem:[%s1] sm:$0xff] %vm79, %v78
  %s81 = scalar_lea.vmem %s0, 135
  %s82 = smov 3
  %v83 = vld [vmem:[%s81] ss:$16 sm:%s82]
  %s84 = scalar_lea.vmem %s0, 135
  %s85 = smov 12
  %v86 = vld [vmem:[%s84] ss:$16 sm:%s85]
  %vm87 = vcmask 1043458
  %v88 = vsel %vm87, %v86, %v83
  %s89 = scalar_lea.vmem %s0, 135
  %s90 = smov 48
  %v91 = vld [vmem:[%s89] ss:$16 sm:%s90]
  %vm92 = vcmask 1045508
  %v93 = vsel %vm92, %v91, %v88
  %s94 = scalar_lea.vmem %s0, 135
  %s95 = smov 192
  %v96 = vld [vmem:[%s94] ss:$16 sm:%s95]
  %vm97 = vcmask 1047558
  %v98 = vsel %vm97, %v96, %v93
  %99 = vrot.lane.b32.xlu0 %v98, 112
  %v100 = vpop.permute.xlu0 %99
  %vm101 = vcmask 1048448
  %s102 = scalar_lea.vmem %s1, 16
  %103 = vst.msk [vmem:[%s102] sm:$0xff] %vm101, %v100
  %s104 = scalar_lea.vmem %s0, 6
  %s105 = smov 3
  %v106 = vld [vmem:[%s104] ss:$16 sm:%s105]
  %s107 = scalar_lea.vmem %s0, 6
  %s108 = smov 12
  %v109 = vld [vmem:[%s107] ss:$16 sm:%s108]
  %vm110 = vcmask 1043458
  %v111 = vsel %vm110, %v109, %v106
  %s112 = scalar_lea.vmem %s0, 6
  %s113 = smov 48
  %v114 = vld [vmem:[%s112] ss:$16 sm:%s113]
  %vm115 = vcmask 1045508
  %v116 = vsel %vm115, %v114, %v111
  %s117 = scalar_lea.vmem %s0, 6
  %s118 = smov 192
  %v119 = vld [vmem:[%s117] ss:$16 sm:%s118]
  %vm120 = vcmask 1047558
  %v121 = vsel %vm120, %v119, %v116
  %122 = vrot.lane.b32.xlu0 %v121, 96
  %v123 = vpop.permute.xlu0 %122
  %vm124 = vcmask 917248
  %125 = vst.msk [vmem:[%s1] sm:$0xff] %vm124, %v123
  %s126 = scalar_lea.vmem %s0, 134
  %s127 = smov 3
  %v128 = vld [vmem:[%s126] ss:$16 sm:%s127]
  %s129 = scalar_lea.vmem %s0, 134
  %s130 = smov 12
  %v131 = vld [vmem:[%s129] ss:$16 sm:%s130]
  %vm132 = vcmask 1043458
  %v133 = vsel %vm132, %v131, %v128
  %s134 = scalar_lea.vmem %s0, 134
  %s135 = smov 48
  %v136 = vld [vmem:[%s134] ss:$16 sm:%s135]
  %vm137 = vcmask 1045508
  %v138 = vsel %vm137, %v136, %v133
  %s139 = scalar_lea.vmem %s0, 134
  %s140 = smov 192
  %v141 = vld [vmem:[%s139] ss:$16 sm:%s140]
  %vm142 = vcmask 1047558
  %v143 = vsel %vm142, %v141, %v138
  %144 = vrot.lane.b32.xlu0 %v143, 96
  %v145 = vpop.permute.xlu0 %144
  %vm146 = vcmask 917248
  %s147 = scalar_lea.vmem %s1, 16
  %148 = vst.msk [vmem:[%s147] sm:$0xff] %vm146, %v145
  %s149 = scalar_lea.vmem %s0, 5
  %s150 = smov 3
  %v151 = vld [vmem:[%s149] ss:$16 sm:%s150]
  %s152 = scalar_lea.vmem %s0, 5
  %s153 = smov 12
  %v154 = vld [vmem:[%s152] ss:$16 sm:%s153]
  %vm155 = vcmask 1043458
  %v156 = vsel %vm155, %v154, %v151
  %s157 = scalar_lea.vmem %s0, 5
  %s158 = smov 48
  %v159 = vld [vmem:[%s157] ss:$16 sm:%s158]
  %vm160 = vcmask 1045508
  %v161 = vsel %vm160, %v159, %v156
  %s162 = scalar_lea.vmem %s0, 5
  %s163 = smov 192
  %v164 = vld [vmem:[%s162] ss:$16 sm:%s163]
  %vm165 = vcmask 1047558
  %v166 = vsel %vm165, %v164, %v161
  %167 = vrot.lane.b32.xlu0 %v166, 80
  %v168 = vpop.permute.xlu0 %167
  %vm169 = vcmask 786048
  %170 = vst.msk [vmem:[%s1] sm:$0xff] %vm169, %v168
  %s171 = scalar_lea.vmem %s0, 133
  %s172 = smov 3
  %v173 = vld [vmem:[%s171] ss:$16 sm:%s172]
  %s174 = scalar_lea.vmem %s0, 133
  %s175 = smov 12
  %v176 = vld [vmem:[%s174] ss:$16 sm:%s175]
  %vm177 = vcmask 1043458
  %v178 = vsel %vm177, %v176, %v173
  %s179 = scalar_lea.vmem %s0, 133
  %s180 = smov 48
  %v181 = vld [vmem:[%s179] ss:$16 sm:%s180]
  %vm182 = vcmask 1045508
  %v183 = vsel %vm182, %v181, %v178
  %s184 = scalar_lea.vmem %s0, 133
  %s185 = smov 192
  %v186 = vld [vmem:[%s184] ss:$16 sm:%s185]
  %vm187 = vcmask 1047558
  %v188 = vsel %vm187, %v186, %v183
  %189 = vrot.lane.b32.xlu0 %v188, 80
  %v190 = vpop.permute.xlu0 %189
  %vm191 = vcmask 786048
  %s192 = scalar_lea.vmem %s1, 16
  %193 = vst.msk [vmem:[%s192] sm:$0xff] %vm191, %v190
  %s194 = scalar_lea.vmem %s0, 4
  %s195 = smov 3
  %v196 = vld [vmem:[%s194] ss:$16 sm:%s195]
  %s197 = scalar_lea.vmem %s0, 4
  %s198 = smov 12
  %v199 = vld [vmem:[%s197] ss:$16 sm:%s198]
  %vm200 = vcmask 1043458
  %v201 = vsel %vm200, %v199, %v196
  %s202 = scalar_lea.vmem %s0, 4
  %s203 = smov 48
  %v204 = vld [vmem:[%s202] ss:$16 sm:%s203]
  %vm205 = vcmask 1045508
  %v206 = vsel %vm205, %v204, %v201
  %s207 = scalar_lea.vmem %s0, 4
  %s208 = smov 192
  %v209 = vld [vmem:[%s207] ss:$16 sm:%s208]
  %vm210 = vcmask 1047558
  %v211 = vsel %vm210, %v209, %v206
  %212 = vrot.lane.b32.xlu0 %v211, 64
  %v213 = vpop.permute.xlu0 %212
  %vm214 = vcmask 654848
  %215 = vst.msk [vmem:[%s1] sm:$0xff] %vm214, %v213
  %s216 = scalar_lea.vmem %s0, 132
  %s217 = smov 3
  %v218 = vld [vmem:[%s216] ss:$16 sm:%s217]
  %s219 = scalar_lea.vmem %s0, 132
  %s220 = smov 12
  %v221 = vld [vmem:[%s219] ss:$16 sm:%s220]
  %vm222 = vcmask 1043458
  %v223 = vsel %vm222, %v221, %v218
  %s224 = scalar_lea.vmem %s0, 132
  %s225 = smov 48
  %v226 = vld [vmem:[%s224] ss:$16 sm:%s225]
  %vm227 = vcmask 1045508
  %v228 = vsel %vm227, %v226, %v223
  %s229 = scalar_lea.vmem %s0, 132
  %s230 = smov 192
  %v231 = vld [vmem:[%s229] ss:$16 sm:%s230]
  %vm232 = vcmask 1047558
  %v233 = vsel %vm232, %v231, %v228
  %234 = vrot.lane.b32.xlu0 %v233, 64
  %v235 = vpop.permute.xlu0 %234
  %vm236 = vcmask 654848
  %s237 = scalar_lea.vmem %s1, 16
  %238 = vst.msk [vmem:[%s237] sm:$0xff] %vm236, %v235
  %s239 = scalar_lea.vmem %s0, 3
  %s240 = smov 3
  %v241 = vld [vmem:[%s239] ss:$16 sm:%s240]
  %s242 = scalar_lea.vmem %s0, 3
  %s243 = smov 12
  %v244 = vld [vmem:[%s242] ss:$16 sm:%s243]
  %vm245 = vcmask 1043458
  %v246 = vsel %vm245, %v244, %v241
  %s247 = scalar_lea.vmem %s0, 3
  %s248 = smov 48
  %v249 = vld [vmem:[%s247] ss:$16 sm:%s248]
  %vm250 = vcmask 1045508
  %v251 = vsel %vm250, %v249, %v246
  %s252 = scalar_lea.vmem %s0, 3
  %s253 = smov 192
  %v254 = vld [vmem:[%s252] ss:$16 sm:%s253]
  %vm255 = vcmask 1047558
  %v256 = vsel %vm255, %v254, %v251
  %257 = vrot.lane.b32.xlu0 %v256, 48
  %v258 = vpop.permute.xlu0 %257
  %vm259 = vcmask 523648
  %260 = vst.msk [vmem:[%s1] sm:$0xff] %vm259, %v258
  %s261 = scalar_lea.vmem %s0, 131
  %s262 = smov 3
  %v263 = vld [vmem:[%s261] ss:$16 sm:%s262]
  %s264 = scalar_lea.vmem %s0, 131
  %s265 = smov 12
  %v266 = vld [vmem:[%s264] ss:$16 sm:%s265]
  %vm267 = vcmask 1043458
  %v268 = vsel %vm267, %v266, %v263
  %s269 = scalar_lea.vmem %s0, 131
  %s270 = smov 48
  %v271 = vld [vmem:[%s269] ss:$16 sm:%s270]
  %vm272 = vcmask 1045508
  %v273 = vsel %vm272, %v271, %v268
  %s274 = scalar_lea.vmem %s0, 131
  %s275 = smov 192
  %v276 = vld [vmem:[%s274] ss:$16 sm:%s275]
  %vm277 = vcmask 1047558
  %v278 = vsel %vm277, %v276, %v273
  %279 = vrot.lane.b32.xlu0 %v278, 48
  %v280 = vpop.permute.xlu0 %279
  %vm281 = vcmask 523648
  %s282 = scalar_lea.vmem %s1, 16
  %283 = vst.msk [vmem:[%s282] sm:$0xff] %vm281, %v280
  %s284 = scalar_lea.vmem %s0, 2
  %s285 = smov 3
  %v286 = vld [vmem:[%s284] ss:$16 sm:%s285]
  %s287 = scalar_lea.vmem %s0, 2
  %s288 = smov 12
  %v289 = vld [vmem:[%s287] ss:$16 sm:%s288]
  %vm290 = vcmask 1043458
  %v291 = vsel %vm290, %v289, %v286
  %s292 = scalar_lea.vmem %s0, 2
  %s293 = smov 48
  %v294 = vld [vmem:[%s292] ss:$16 sm:%s293]
  %vm295 = vcmask 1045508
  %v296 = vsel %vm295, %v294, %v291
  %s297 = scalar_lea.vmem %s0, 2
  %s298 = smov 192
  %v299 = vld [vmem:[%s297] ss:$16 sm:%s298]
  %vm300 = vcmask 1047558
  %v301 = vsel %vm300, %v299, %v296
  %302 = vrot.lane.b32.xlu0 %v301, 32
  %v303 = vpop.permute.xlu0 %302
  %vm304 = vcmask 392448
  %305 = vst.msk [vmem:[%s1] sm:$0xff] %vm304, %v303
  %s306 = scalar_lea.vmem %s0, 130
  %s307 = smov 3
  %v308 = vld [vmem:[%s306] ss:$16 sm:%s307]
  %s309 = scalar_lea.vmem %s0, 130
  %s310 = smov 12
  %v311 = vld [vmem:[%s309] ss:$16 sm:%s310]
  %vm312 = vcmask 1043458
  %v313 = vsel %vm312, %v311, %v308
  %s314 = scalar_lea.vmem %s0, 130
  %s315 = smov 48
  %v316 = vld [vmem:[%s314] ss:$16 sm:%s315]
  %vm317 = vcmask 1045508
  %v318 = vsel %vm317, %v316, %v313
  %s319 = scalar_lea.vmem %s0, 130
  %s320 = smov 192
  %v321 = vld [vmem:[%s319] ss:$16 sm:%s320]
  %vm322 = vcmask 1047558
  %v323 = vsel %vm322, %v321, %v318
  %324 = vrot.lane.b32.xlu0 %v323, 32
  %v325 = vpop.permute.xlu0 %324
  %vm326 = vcmask 392448
  %s327 = scalar_lea.vmem %s1, 16
  %328 = vst.msk [vmem:[%s327] sm:$0xff] %vm326, %v325
  %s329 = scalar_lea.vmem %s0, 1
  %s330 = smov 3
  %v331 = vld [vmem:[%s329] ss:$16 sm:%s330]
  %s332 = scalar_lea.vmem %s0, 1
  %s333 = smov 12
  %v334 = vld [vmem:[%s332] ss:$16 sm:%s333]
  %vm335 = vcmask 1043458
  %v336 = vsel %vm335, %v334, %v331
  %s337 = scalar_lea.vmem %s0, 1
  %s338 = smov 48
  %v339 = vld [vmem:[%s337] ss:$16 sm:%s338]
  %vm340 = vcmask 1045508
  %v341 = vsel %vm340, %v339, %v336
  %s342 = scalar_lea.vmem %s0, 1
  %s343 = smov 192
  %v344 = vld [vmem:[%s342] ss:$16 sm:%s343]
  %vm345 = vcmask 1047558
  %v346 = vsel %vm345, %v344, %v341
  %347 = vrot.lane.b32.xlu0 %v346, 16
  %v348 = vpop.permute.xlu0 %347
  %vm349 = vcmask 261248
  %350 = vst.msk [vmem:[%s1] sm:$0xff] %vm349, %v348
  %s351 = scalar_lea.vmem %s0, 9
  %s352 = smov 3
  %v353 = vld [vmem:[%s351] ss:$16 sm:%s352]
  %s354 = scalar_lea.vmem %s0, 9
  %s355 = smov 12
  %v356 = vld [vmem:[%s354] ss:$16 sm:%s355]
  %vm357 = vcmask 1043458
  %v358 = vsel %vm357, %v356, %v353
  %s359 = scalar_lea.vmem %s0, 9
  %s360 = smov 48
  %v361 = vld [vmem:[%s359] ss:$16 sm:%s360]
  %vm362 = vcmask 1045508
  %v363 = vsel %vm362, %v361, %v358
  %s364 = scalar_lea.vmem %s0, 9
  %s365 = smov 192
  %v366 = vld [vmem:[%s364] ss:$16 sm:%s365]
  %vm367 = vcmask 1047558
  %v368 = vsel %vm367, %v366, %v363
  %369 = vrot.lane.b32.xlu0 %v368, 16
  %v370 = vpop.permute.xlu0 %369
  %vm371 = vcmask 261248
  %s372 = scalar_lea.vmem %s1, 8
  %373 = vst.msk [vmem:[%s372] sm:$0xff] %vm371, %v370
  %s374 = scalar_lea.vmem %s0, 129
  %s375 = smov 3
  %v376 = vld [vmem:[%s374] ss:$16 sm:%s375]
  %s377 = scalar_lea.vmem %s0, 129
  %s378 = smov 12
  %v379 = vld [vmem:[%s377] ss:$16 sm:%s378]
  %vm380 = vcmask 1043458
  %v381 = vsel %vm380, %v379, %v376
  %s382 = scalar_lea.vmem %s0, 129
  %s383 = smov 48
  %v384 = vld [vmem:[%s382] ss:$16 sm:%s383]
  %vm385 = vcmask 1045508
  %v386 = vsel %vm385, %v384, %v381
  %s387 = scalar_lea.vmem %s0, 129
  %s388 = smov 192
  %v389 = vld [vmem:[%s387] ss:$16 sm:%s388]
  %vm390 = vcmask 1047558
  %v391 = vsel %vm390, %v389, %v386
  %392 = vrot.lane.b32.xlu0 %v391, 16
  %v393 = vpop.permute.xlu0 %392
  %vm394 = vcmask 261248
  %s395 = scalar_lea.vmem %s1, 16
  %396 = vst.msk [vmem:[%s395] sm:$0xff] %vm394, %v393
  %s397 = scalar_lea.vmem %s0, 137
  %s398 = smov 3
  %v399 = vld [vmem:[%s397] ss:$16 sm:%s398]
  %s400 = scalar_lea.vmem %s0, 137
  %s401 = smov 12
  %v402 = vld [vmem:[%s400] ss:$16 sm:%s401]
  %vm403 = vcmask 1043458
  %v404 = vsel %vm403, %v402, %v399
  %s405 = scalar_lea.vmem %s0, 137
  %s406 = smov 48
  %v407 = vld [vmem:[%s405] ss:$16 sm:%s406]
  %vm408 = vcmask 1045508
  %v409 = vsel %vm408, %v407, %v404
  %s410 = scalar_lea.vmem %s0, 137
  %s411 = smov 192
  %v412 = vld [vmem:[%s410] ss:$16 sm:%s411]
  %vm413 = vcmask 1047558
  %v414 = vsel %vm413, %v412, %v409
  %415 = vrot.lane.b32.xlu0 %v414, 16
  %v416 = vpop.permute.xlu0 %415
  %vm417 = vcmask 261248
  %s418 = scalar_lea.vmem %s1, 24
  %419 = vst.msk [vmem:[%s418] sm:$0xff] %vm417, %v416

// kernel: _kan_linear_forward.1
$region0: #{_kan_linear_forward.1}
  #allocation0 [shape = 'u32[]', space=smem, size = 0x4, offset = 0x4, fixed_abs, tag = 'smem constant byte address 0x4 - core index']
  #allocation1 [shape = 'u32[72,128]{1,0:T(1,128)}', space=vmem, size = 0x9000, scoped, tag = 'internal scratch']
  %s0 = inlined_call_operand.vmem [shape: f32[16,160], index: 0, kind: input, shape index: {}]
  %s1 = inlined_call_operand.vmem [shape: f32[16,160], index: 1, kind: input, shape index: {}]
  %s2 = inlined_call_operand.vmem [shape: f32[3,16,128], index: 2, kind: input, shape index: {}]
  %s3 = inlined_call_operand.vmem [shape: f32[3,16,128], index: 3, kind: input, shape index: {}]
  %s4 = inlined_call_operand.vmem [shape: f32[96,32], index: 4, kind: input, shape index: {}]
  %s5 = inlined_call_operand.vmem [shape: f32[16,32], index: 5, kind: input, shape index: {}]
  %s6 = inlined_call_operand.hbm [shape: f32[16,32], index: 6, kind: output, shape index: {}]
  %s7 = sld [smem:[#allocation0]]
  $region34: #{_kan_linear_forward.1} parent=0
    _
  %s9 = ssub.s32 1, %s7
  %s10 = scalar_select 0, %s9, %s7
  $region1: #{_kan_linear_forward.1} parent=0
    #allocation2 [shape = 'u8[8192]{0}', space=vmem, size = 0x2000, scoped, tag = 'output window, operand 0, single buffered']
    #allocation3 [shape = 's32[1]{0}', space=sflag, size = 0x4, scoped, tag = 'scoped memory for _kan_linear_forward.1']
    %11 = vsyncpa [#allocation3], 0
    // Predicated region
    $region2: #{_kan_linear_forward.1} parent=1 // pred_check
      _
    $region3: #{_kan_linear_forward.1} parent=1 // pred_check_branch
      %13 = sbr.rel (0) target = $region5
    $region4: #{_kan_linear_forward.1} parent=1 // pred_region
      _
    $region5: #{_kan_linear_forward.1} parent=1 // pred_fallthru
      _
    // Predicated region
    $region6: #{_kan_linear_forward.1} parent=1 // pred_check
      _
    $region7: #{_kan_linear_forward.1} parent=1 // pred_check_branch
      %15 = sbr.rel (0) target = $region9
    $region8: #{_kan_linear_forward.1} parent=1 // pred_region
      _
    $region9: #{_kan_linear_forward.1} parent=1 // pred_fallthru
      _
    // Predicated region
    $region10: #{_kan_linear_forward.1} parent=1 // pred_check
      _
    $region11: #{_kan_linear_forward.1} parent=1 // pred_check_branch
      %17 = sbr.rel (0) target = $region13
    $region12: #{_kan_linear_forward.1} parent=1 // pred_region
      _
    $region13: #{_kan_linear_forward.1} parent=1 // pred_fallthru
      _
    // Predicated region
    $region14: #{_kan_linear_forward.1} parent=1 // pred_check
      _
    $region15: #{_kan_linear_forward.1} parent=1 // pred_check_branch
      %19 = sbr.rel (0) target = $region17
    $region16: #{_kan_linear_forward.1} parent=1 // pred_region
      _
    $region17: #{_kan_linear_forward.1} parent=1 // pred_fallthru
      _
    // Predicated region
    $region18: #{_kan_linear_forward.1} parent=1 // pred_check
      _
    $region19: #{_kan_linear_forward.1} parent=1 // pred_check_branch
      %21 = sbr.rel (0) target = $region21
    $region20: #{_kan_linear_forward.1} parent=1 // pred_region
      _
    $region21: #{_kan_linear_forward.1} parent=1 // pred_fallthru
      _
    // Predicated region
    $region22: #{_kan_linear_forward.1} parent=1 // pred_check
      _
    $region23: #{_kan_linear_forward.1} parent=1 // pred_check_branch
      %23 = sbr.rel (0) target = $region25
    $region24: #{_kan_linear_forward.1} parent=1 // pred_region
      _
    $region25: #{_kan_linear_forward.1} parent=1 // pred_fallthru
      _
    %v24 = vld [vmem:[%s0] sm:$0xff]
    %v25 = vld [vmem:[%s0 + $0x8] sm:$0xff]
    %v26 = vld [vmem:[%s0 + $0x10] sm:$0xff]
    %v27 = vld [vmem:[%s0 + $0x18] sm:$0xff]
    %v28 = vld [vmem:[%s1] sm:$0xff]
    %v29 = vld [vmem:[%s1 + $0x8] sm:$0xff]
    %v30 = vld [vmem:[%s1 + $0x10] sm:$0xff]
    %v31 = vld [vmem:[%s1 + $0x18] sm:$0xff]
    %v32 = vsub.f32 %v24, %v28
    %v33 = vsub.f32 %v25, %v29
    %v34 = vsub.f32 %v26, %v30
    %v35 = vsub.f32 %v27, %v31
    %vm36 = vcmp.ge.f32.partialorder %v32, 0.0
    %vm37 = vcmp.ge.f32.partialorder %v33, 0.0
    %vm38 = vcmp.ge.f32.partialorder %v34, 0.0
    %vm39 = vcmp.ge.f32.partialorder %v35, 0.0
    %v40 = vsel %vm36, 1, 0
    %v41 = vsel %vm37, 1, 0
    %v42 = vsel %vm38, 1, 0
    %v43 = vsel %vm39, 1, 0
    %v44 = vcvt.s32.f32 %v40
    %v45 = vcvt.s32.f32 %v41
    %v46 = vcvt.s32.f32 %v42
    %v47 = vcvt.s32.f32 %v43
    %52 = vrot.lane.b32.xlu0 %v44, 112
    %v53 = vpop.permute.xlu0 %52
    %54 = vrot.lane.b32.xlu0 %v45, 112
    %v55 = vpop.permute.xlu0 %54
    %56 = vrot.lane.b32.xlu0 %v46, 112
    %v57 = vpop.permute.xlu0 %56
    %58 = vrot.lane.b32.xlu0 %v47, 112
    %v59 = vpop.permute.xlu0 %58
    %vm60 = vcmask 916480
    %v61 = vsel %vm60, %v53, %v55
    %v62 = vsel %vm60, %v57, %v59
    %v67 = vsub.f32 %v44, %v61
    %v68 = vsub.f32 %v45, %v55
    %v69 = vsub.f32 %v46, %v62
    %v70 = vsub.f32 %v47, %v59
    %v71 = vld [vmem:[%s2] sm:$0xff]
    %v72 = vld [vmem:[%s2 + $0x8] sm:$0xff]
    %v73 = vmul.f32 %v32, %v71
    %v74 = vmul.f32 %v34, %v72
    %v75 = vld [vmem:[%s3] sm:$0xff]
    %v76 = vld [vmem:[%s3 + $0x8] sm:$0xff]
    %79 = vrot.lane.b32.xlu0 %v75, 32
    %v80 = vpop.permute.xlu0 %79
    %81 = vrot.lane.b32.xlu0 %v76, 32
    %v82 = vpop.permute.xlu0 %81
    %v85 = vmul.f32 %v32, %v80
    %v86 = vmul.f32 %v33, %v80
    %v87 = vmul.f32 %v34, %v82
    %v88 = vmul.f32 %v35, %v82
    %v89 = vmul.f32 %v73, %v67
    %v90 = vmul.f32 %v74, %v69
    %95 = vrot.lane.b32.xlu0 %v67, 16
    %v96 = vpop.permute.xlu0 %95
    %97 = vrot.lane.b32.xlu0 %v68, 16
    %v98 = vpop.permute.xlu0 %97
    %99 = vrot.lane.b32.xlu0 %v69, 16
    %v100 = vpop.permute.xlu0 %99
    %101 = vrot.lane.b32.xlu0 %v70, 16
    %v102 = vpop.permute.xlu0 %101
    %vm103 = vcmask 130048
    %v104 = vsel %vm103, %v96, %v98
    %v105 = vsel %vm103, %v100, %v102
    %v110 = vmul.f32 %v85, %v96
    %v111 = vmul.f32 %v86, %v104
    %v112 = vmul.f32 %v87, %v100
    %v113 = vmul.f32 %v88, %v105
    %118 = vrot.lane.b32.xlu0 %v110, 96
    %v119 = vpop.permute.xlu0 %118
    %120 = vrot.lane.b32.xlu0 %v111, 96
    %v121 = vpop.permute.xlu0 %120
    %122 = vrot.lane.b32.xlu0 %v112, 96
    %v123 = vpop.permute.xlu0 %122
    %124 = vrot.lane.b32.xlu0 %v113, 96
    %v125 = vpop.permute.xlu0 %124
    %vm126 = vcmask 785408
    %v127 = vsel %vm126, %v119, %v121
    %v128 = vsel %vm126, %v123, %v125
    %v131 = vadd.f32 %v89, %v127
    %v132 = vadd.f32 %v90, %v128
    %s133 = scalar_lea.vmem %s2, 16
    %v134 = vld [vmem:[%s133] sm:$0xff]
    %v135 = vld [vmem:[%s133 + $0x8] sm:$0xff]
    %v136 = vmul.f32 %v32, %v134
    %v137 = vmul.f32 %v34, %v135
    %s138 = scalar_lea.vmem %s3, 16
    %v139 = vld [vmem:[%s138] sm:$0xff]
    %v140 = vld [vmem:[%s138 + $0x8] sm:$0xff]
    %143 = vrot.lane.b32.xlu0 %v139, 48
    %v144 = vpop.permute.xlu0 %143
    %145 = vrot.lane.b32.xlu0 %v140, 48
    %v146 = vpop.permute.xlu0 %145
    %v149 = vmul.f32 %v32, %v144
    %v150 = vmul.f32 %v33, %v144
    %v151 = vmul.f32 %v34, %v146
    %v152 = vmul.f32 %v35, %v146
    %v153 = vmul.f32 %v136, %v131
    %v154 = vmul.f32 %v137, %v132
    %157 = vrot.lane.b32.xlu0 %v131, 32
    %v158 = vpop.permute.xlu0 %157
    %159 = vrot.lane.b32.xlu0 %v132, 32
    %v160 = vpop.permute.xlu0 %159
    %v163 = vmul.f32 %v149, %v158
    %v164 = vmul.f32 %v150, %v158
    %v165 = vmul.f32 %v151, %v160
    %v166 = vmul.f32 %v152, %v160
    %171 = vrot.lane.b32.xlu0 %v163, 80
    %v172 = vpop.permute.xlu0 %171
    %173 = vrot.lane.b32.xlu0 %v164, 80
    %v174 = vpop.permute.xlu0 %173
    %175 = vrot.lane.b32.xlu0 %v165, 80
    %v176 = vpop.permute.xlu0 %175
    %177 = vrot.lane.b32.xlu0 %v166, 80
    %v178 = vpop.permute.xlu0 %177
    %vm179 = vcmask 654336
    %v180 = vsel %vm179, %v172, %v174
    %v181 = vsel %vm179, %v176, %v178
    %v184 = vadd.f32 %v153, %v180
    %v185 = vadd.f32 %v154, %v181
    %s186 = scalar_lea.vmem %s2, 32
    %v187 = vld [vmem:[%s186] sm:$0xff]
    %v188 = vld [vmem:[%s186 + $0x8] sm:$0xff]
    %v189 = vmul.f32 %v32, %v187
    %v190 = vmul.f32 %v34, %v188
    %s191 = scalar_lea.vmem %s3, 32
    %v192 = vld [vmem:[%s191] sm:$0xff]
    %v193 = vld [vmem:[%s191 + $0x8] sm:$0xff]
    %196 = vrot.lane.b32.xlu0 %v192, 64
    %v197 = vpop.permute.xlu0 %196
    %198 = vrot.lane.b32.xlu0 %v193, 64
    %v199 = vpop.permute.xlu0 %198
    %v202 = vmul.f32 %v32, %v197
    %v203 = vmul.f32 %v33, %v197
    %v204 = vmul.f32 %v34, %v199
    %v205 = vmul.f32 %v35, %v199
    %v206 = vmul.f32 %v189, %v184
    %v207 = vmul.f32 %v190, %v185
    %210 = vrot.lane.b32.xlu0 %v184, 48
    %v211 = vpop.permute.xlu0 %210
    %212 = vrot.lane.b32.xlu0 %v185, 48
    %v213 = vpop.permute.xlu0 %212
    %v216 = vmul.f32 %v202, %v211
    %v217 = vmul.f32 %v203, %v211
    %v218 = vmul.f32 %v204, %v213
    %v219 = vmul.f32 %v205, %v213
    %224 = vrot.lane.b32.xlu0 %v216, 64
    %v225 = vpop.permute.xlu0 %224
    %226 = vrot.lane.b32.xlu0 %v217, 64
    %v227 = vpop.permute.xlu0 %226
    %228 = vrot.lane.b32.xlu0 %v218, 64
    %v229 = vpop.permute.xlu0 %228
    %230 = vrot.lane.b32.xlu0 %v219, 64
    %v231 = vpop.permute.xlu0 %230
    %vm232 = vcmask 523264
    %v233 = vsel %vm232, %v225, %v227
    %v234 = vsel %vm232, %v229, %v231
    %v237 = vadd.f32 %v206, %v233
    %v238 = vadd.f32 %v207, %v234
    %v239 = vxor.u32 %v24, 2147483648
    %v240 = vxor.u32 %v26, 2147483648
    %v241 = vmul.f32 %v239, 1.442695
    %v242 = vpow.pop %v241
    %v243 = vmul.f32 %v240, 1.442695
    %v244 = vpow.pop %v243
    %v245 = vadd.f32 %v242, 1.0
    %v246 = vadd.f32 %v244, 1.0
    %v247 = vrcp.pop %v245
    %v248 = vmul.f32 %v245, %v247
    %v249 = vsub.f32 1.0, %v248
    %v250 = vmul.f32 %v247, %v249
    %v251 = vadd.f32 %v247, %v250
    %vm252 = vweird.f32 %v245
    %vm253 = vweird.f32 %v247
    %vm254 = vmor %vm252, %vm253
    %v255 = vsel %vm254, %v247, %v251
    %v256 = vand.u32 2147483647, %v245
    %vm257 = vcmp.eq.f32.partialorder %v256, 8.507059e+37
    %v258 = vand.u32 %v245, 2147483648
    %v259 = vor.u32 1.1754944e-38, %v258
    %v260 = vsel %vm257, %v259, %v255
    %v261 = vmul.f32 1.0, %v260
    %v262 = vrcp.pop %v246
    %v263 = vmul.f32 %v246, %v262
    %v264 = vsub.f32 1.0, %v263
    %v265 = vmul.f32 %v262, %v264
    %v266 = vadd.f32 %v262, %v265
    %vm267 = vweird.f32 %v246
    %vm268 = vweird.f32 %v262
    %vm269 = vmor %vm267, %vm268
    %v270 = vsel %vm269, %v262, %v266
    %v271 = vand.u32 2147483647, %v246
    %vm272 = vcmp.eq.f32.partialorder %v271, 8.507059e+37
    %v273 = vand.u32 %v246, 2147483648
    %v274 = vor.u32 1.1754944e-38, %v273
    %v275 = vsel %vm272, %v274, %v270
    %v276 = vmul.f32 1.0, %v275
    %v277 = vmul.f32 %v24, %v261
    %v278 = vmul.f32 %v26, %v276
    %v279 = vld [vmem:[%s4] sm:$0xff]
    %v280 = vld [vmem:[%s4 + $0x8] sm:$0xff]
    %v281 = vld [vmem:[%s4 + $0x10] sm:$0xff]
    %v282 = vld [vmem:[%s4 + $0x18] sm:$0xff]
    %v283 = vld [vmem:[%s4 + $0x20] sm:$0xff]
    %v284 = vld [vmem:[%s4 + $0x28] sm:$0xff]
    %v285 = vld [vmem:[%s4 + $0x30] sm:$0xff]
    %v286 = vld [vmem:[%s4 + $0x38] sm:$0xff]
    %v287 = vld [vmem:[%s4 + $0x40] sm:$0xff]
    %v288 = vld [vmem:[%s4 + $0x48] sm:$0xff]
    %v289 = vld [vmem:[%s4 + $0x50] sm:$0xff]
    %v290 = vld [vmem:[%s4 + $0x58] sm:$0xff]
    %v291 = vld [vmem:[%s5] sm:$0xff]
    %v292 = vld [vmem:[%s5 + $0x8] sm:$0xff]
    %v294 = vsel %vm103, %v277, 0
    %v297 = vsel %vm103, %v278, 0
    %299 = vmatpush.msra.mxu0 0.0
    %300 = vmatpush.msra.mxu0 0.0
    %301 = vmatpush.msra.mxu0 0.0
    %302 = vmatpush.msra.mxu0 0.0
    %303 = vmatpush.msra.mxu0 0.0
    %304 = vmatpush.msra.mxu0 0.0
    %305 = vmatpush.msra.mxu0 0.0
    %306 = vmatpush.msra.mxu0 0.0
    %307 = vmatpush.msra.mxu0 0.0
    %308 = vmatpush.msra.mxu0 0.0
    %309 = vmatpush.msra.mxu0 0.0
    %310 = vmatpush.msra.mxu0 0.0
    %311 = vmatpush.msra.mxu0 0.0
    %312 = vmatpush.msra.mxu0 0.0
    %313 = vmatpush.msra.mxu0 %v292
    %314 = vmatpush.msra.mxu0 %v291
    %315 = vmatmul.f32.gmra.mxu0 %v294
    %v316 = vpop.f32.mrf.mxu0
    %v317 = vadd.f32 0.0, %v316
    %318 = vmatmul.f32.gmra.mxu0 %v297
    %v319 = vpop.f32.mrf.mxu0
    %v320 = vadd.f32 0.0, %v319
    %321 = vdwg.mxu0
    %v323 = vsel %vm126, %v237, 0
    %v326 = vsel %vm126, %v238, 0
    %328 = vmatpush.msra.mxu0 0.0
    %329 = vmatpush.msra.mxu0 0.0
    %330 = vmatpush.msra.mxu0 0.0
    %331 = vmatpush.msra.mxu0 0.0
    %332 = vmatpush.msra.mxu0 %v290
    %333 = vmatpush.msra.mxu0 %v289
    %334 = vmatpush.msra.mxu0 %v288
    %335 = vmatpush.msra.mxu0 %v287
    %336 = vmatpush.msra.mxu0 %v286
    %337 = vmatpush.msra.mxu0 %v285
    %338 = vmatpush.msra.mxu0 %v284
    %339 = vmatpush.msra.mxu0 %v283
    %340 = vmatpush.msra.mxu0 %v282
    %341 = vmatpush.msra.mxu0 %v281
    %342 = vmatpush.msra.mxu0 %v280
    %343 = vmatpush.msra.mxu0 %v279
    %344 = vmatmul.f32.gmra.mxu0 %v323
    %v345 = vpop.f32.mrf.mxu0
    %v346 = vadd.f32 %v317, %v345
    %347 = vmatmul.f32.gmra.mxu0 %v326
    %v348 = vpop.f32.mrf.mxu0
    %v349 = vadd.f32 %v320, %v348
    %350 = vdwg.mxu0
    %vm351 = vcmask 261120
    %352 = vst.msk [vmem:[#allocation2] sm:$0xff] %vm351, %v346
    %353 = vst.msk [vmem:[#allocation2 + $0x8] sm:$0xff] %vm351, %v349
    // Predicated region
    $region26: #{_kan_linear_forward.1} parent=1 // pred_check
      _
    $region27: #{_kan_linear_forward.1} parent=1 // pred_check_branch
      %355 = sbr.rel (0) target = $region29
    $region28: #{_kan_linear_forward.1} parent=1 // pred_region
      %357 = vsyncadd [#allocation3], 0
      %s358 = sshll.u32 [#allocation2], 4
      %s359 = int_to_ptr.vmem [resolvable:$true] %s358
      %s360 = sshll.u32 %s6, 4
      %s361 = int_to_ptr.hbm [resolvable:$true] %s360
      %366 = dma.vmem_to_hbm [thread:$0]  %s359, 256, %s361, [#allocation3], 128, 128, 8
    $region29: #{_kan_linear_forward.1} parent=1 // pred_fallthru
      _
    // Predicated region
    $region30: #{_kan_linear_forward.1} parent=1 // pred_check
      _
    $region31: #{_kan_linear_forward.1} parent=1 // pred_check_branch
      %368 = sbr.rel (0) target = $region33
    $region32: #{_kan_linear_forward.1} parent=1 // pred_region
      %370 = dma.done [#allocation3], 256
    $region33: #{_kan_linear_forward.1} parent=1 // pred_fallthru
      _
    %371 = vsyncpa [#allocation3], 1

</llo_original>
